<compile_context>
chip_gen: v7x
topology: tpu7x:2x2x1
jax: 0.10.0
libtpu: 0.0.40
codegen_flags: <defaults>
</compile_context>

<pallas_src>
import functools

import jax
import jax.numpy as jnp
from jax.experimental import pallas as pl
from jax.experimental.pallas import tpu as pltpu

EPS = 1e-5


def _round_up(a, b):
    return ((a + b - 1) // b) * b


def _tpu_config():
    """(per-core VMEM bytes, #TensorCores per chip) with safe fallbacks."""
    vmem = 64 << 20       # conservative default (v7x per-core VMEM)
    num_tc = 2
    try:
        info = pltpu.get_tpu_info()
        vmem = int(getattr(info, "vmem_capacity_bytes", vmem))
        # v7x: 64 MiB VMEM per core, 2 TCs; v5e/v6e: 128 MiB, 1 TC.
        num_tc = 2 if vmem <= (64 << 20) else 1
    except Exception:
        pass
    return vmem, num_tc


def _pick_row_tile(n_rows, row_bytes, target_bytes, min_steps):
    """Row tile: multiple of 8 sublanes, ~target_bytes of lane-padded data,
    capped at the (rounded-up) row count.  On 2-TC chips keep >= min_steps
    grid steps (>=2 per core) when the row count allows it; never force a
    split on 1-TC chips."""
    tm = max(8, (target_bytes // max(row_bytes, 1)) // 8 * 8)
    if min_steps > 1 and n_rows >= min_steps * 8:
        tm = min(tm, max(8, (n_rows // min_steps) // 8 * 8))
    tm = min(tm, _round_up(n_rows, 8))
    return tm


def _tile_plan(n_rows, hw, itemsize, vmem_bytes, num_tc):
    row_bytes = _round_up(hw, 128) * itemsize
    target = min(6 << 20, vmem_bytes // 8)
    min_steps = 4 if num_tc >= 2 else 1
    tm = _pick_row_tile(n_rows, row_bytes, target, min_steps)
    tile_bytes = tm * row_bytes
    # double-buffered in + out (+ f32 temps / slack), never above ~7/8 physical
    vmem_limit = int(min(vmem_bytes * 7 // 8,
                         max(4 * tile_bytes + (16 << 20), 32 << 20)))
    return tm, vmem_limit


# ---------------------------------------------------------------------------
# BatchNorm2d — tiled two-pass path on the (N*C, HW) view.
# ---------------------------------------------------------------------------
def _bn_row_stats_kernel(x_ref, mean_ref, m2_ref):
    # One row == one (n, c) slice over HW.  Centered per-row stats: numerically
    # robust; the cross-row (per-channel) fold happens outside on tiny arrays.
    x = x_ref[...].astype(jnp.float32)                       # (tm, HW)
    mean = jnp.mean(x, axis=-1, keepdims=True)               # (tm, 1)
    d = x - mean
    mean_ref[...] = mean
    m2_ref[...] = jnp.sum(d * d, axis=-1, keepdims=True)     # (tm, 1)


def _bn_apply_kernel(x_ref, scale_ref, shift_ref, o_ref):
    x = x_ref[...].astype(jnp.float32)                       # (tm, HW)
    o_ref[...] = (x * scale_ref[...] + shift_ref[...]).astype(o_ref.dtype)


def _batch_norm_2d_tiled(x_nchw, weight, bias):
    N, C, H, W = x_nchw.shape
    HW = H * W
    R = N * C
    x2 = x_nchw.reshape(R, HW)                               # free, contiguous
    itemsize = x2.dtype.itemsize
    vmem_bytes, num_tc = _tpu_config()
    tm, vmem_limit = _tile_plan(R, HW, itemsize, vmem_bytes, num_tc)
    grid = (pl.cdiv(R, tm),)

    # Pass 1: per-row mean / centered M2 (parallel over row tiles; ragged last
    # tile needs no mask — per-row outputs of garbage rows are clipped).
    row_mean, row_m2 = pl.pallas_call(
        _bn_row_stats_kernel,
        out_shape=(jax.ShapeDtypeStruct((R, 1), jnp.float32),
                   jax.ShapeDtypeStruct((R, 1), jnp.float32)),
        grid_spec=pltpu.PrefetchScalarGridSpec(
            num_scalar_prefetch=0,
            grid=grid,
            in_specs=[pl.BlockSpec((tm, HW), lambda i: (i, 0))],
            out_specs=(pl.BlockSpec((tm, 1), lambda i: (i, 0)),
                       pl.BlockSpec((tm, 1), lambda i: (i, 0))),
        ),
        compiler_params=pltpu.CompilerParams(
            dimension_semantics=("parallel",),
            vmem_limit_bytes=vmem_limit),
        cost_estimate=pl.CostEstimate(
            flops=int(4 * R * HW), transcendentals=0,
            bytes_accessed=int(R * HW * itemsize)),
    )(x2)

    # Per-channel fold (Chan's combination; all arrays are N*C elements) and
    # expansion of folded scale/shift back to per-row (R, 1) vectors.
    rm = row_mean.reshape(N, C)
    rm2 = row_m2.reshape(N, C)
    ch_mean = jnp.mean(rm, axis=0)                                    # (C,)
    ch_m2 = jnp.sum(rm2, axis=0) + float(HW) * jnp.sum(
        jnp.square(rm - ch_mean[None, :]), axis=0)
    var = ch_m2 / float(N * HW)                                       # biased
    scale = weight.astype(jnp.float32) * jax.lax.rsqrt(var + EPS)
    shift = bias.astype(jnp.float32) - ch_mean * scale
    scale_rows = jnp.broadcast_to(scale[None, :], (N, C)).reshape(R, 1)
    shift_rows = jnp.broadcast_to(shift[None, :], (N, C)).reshape(R, 1)

    # Pass 2: o = x * scale_row + shift_row (parallel over row tiles).
    out2 = pl.pallas_call(
        _bn_apply_kernel,
        out_shape=jax.ShapeDtypeStruct((R, HW), x_nchw.dtype),
        grid_spec=pltpu.PrefetchScalarGridSpec(
            num_scalar_prefetch=0,
            grid=grid,
            in_specs=[pl.BlockSpec((tm, HW), lambda i: (i, 0)),
                      pl.BlockSpec((tm, 1), lambda i: (i, 0)),
                      pl.BlockSpec((tm, 1), lambda i: (i, 0))],
            out_specs=pl.BlockSpec((tm, HW), lambda i: (i, 0)),
        ),
        compiler_params=pltpu.CompilerParams(
            dimension_semantics=("parallel",),
            vmem_limit_bytes=vmem_limit),
        cost_estimate=pl.CostEstimate(
            flops=int(2 * R * HW), transcendentals=0,
            bytes_accessed=int(2 * R * HW * itemsize)),
    )(x2, scale_rows, shift_rows)

    return out2.reshape(N, C, H, W)


# ---------------------------------------------------------------------------
# BatchNorm2d — fused single-call path for tensors that fit in VMEM
# (one HBM read + one HBM write instead of read/read/write).
# ---------------------------------------------------------------------------
def _bn_fused_kernel(x_ref, w_ref, b_ref, o_ref, *, n_total):
    x = x_ref[...].astype(jnp.float32)                       # (N, C, HW)
    row_sum = jnp.sum(x, axis=-1, keepdims=True)             # (N, C, 1)
    mean = jnp.sum(row_sum, axis=0, keepdims=True) / n_total # (1, C, 1)
    d = x - mean
    m2 = jnp.sum(jnp.sum(d * d, axis=-1, keepdims=True), axis=0, keepdims=True)
    var = m2 / n_total                                       # biased
    scale = jax.lax.rsqrt(var + EPS) * w_ref[...]            # (1, C, 1)
    o_ref[...] = (d * scale + b_ref[...]).astype(o_ref.dtype)


def _batch_norm_2d_fused(x_nchw, weight, bias, vmem_limit):
    N, C, H, W = x_nchw.shape
    HW = H * W
    x3 = x_nchw.reshape(N, C, HW)                            # free, contiguous
    w3 = weight.reshape(1, C, 1).astype(jnp.float32)
    b3 = bias.reshape(1, C, 1).astype(jnp.float32)

    out3 = pl.pallas_call(
        functools.partial(_bn_fused_kernel, n_total=float(N * HW)),
        out_shape=jax.ShapeDtypeStruct((N, C, HW), x_nchw.dtype),
        in_specs=[pl.BlockSpec(memory_space=pltpu.MemorySpace.VMEM),
                  pl.BlockSpec(memory_space=pltpu.MemorySpace.VMEM),
                  pl.BlockSpec(memory_space=pltpu.MemorySpace.VMEM)],
        out_specs=pl.BlockSpec(memory_space=pltpu.MemorySpace.VMEM),
        compiler_params=pltpu.CompilerParams(vmem_limit_bytes=vmem_limit),
        cost_estimate=pl.CostEstimate(
            flops=int(6 * N * C * HW), transcendentals=int(C),
            bytes_accessed=int(2 * N * C * HW * x_nchw.dtype.itemsize)),
    )(x3, w3, b3)

    return out3.reshape(N, C, H, W)


def batch_norm_2d(x_nchw, weight, bias):
    N, C, H, W = x_nchw.shape
    HW = H * W
    vmem_bytes, _ = _tpu_config()
    # VMEM footprint of the fused path (f32 working set, (C, HW) minor tile
    # padded to (8, 128)).
    padded_f32 = N * _round_up(C, 8) * _round_up(HW, 128) * 4
    if padded_f32 <= vmem_bytes // 8:
        vmem_limit = int(vmem_bytes * 3 // 4)
        return _batch_norm_2d_fused(x_nchw, weight, bias, vmem_limit)
    return _batch_norm_2d_tiled(x_nchw, weight, bias)


# ---------------------------------------------------------------------------
# InstanceNorm2d: per-(n, c) stats over HW; rows = N*C instances, single pass.
# ---------------------------------------------------------------------------
def _in_kernel(x_ref, o_ref):
    x = x_ref[...].astype(jnp.float32)                       # (tm, HW)
    mean = jnp.mean(x, axis=-1, keepdims=True)               # (tm, 1)
    d = x - mean
    var = jnp.mean(d * d, axis=-1, keepdims=True)            # biased, centered
    o_ref[...] = (d * jax.lax.rsqrt(var + EPS)).astype(o_ref.dtype)


def instance_norm_2d(x_nchw):
    N, C, H, W = x_nchw.shape
    HW = H * W
    R = N * C
    x2 = x_nchw.reshape(R, HW)                               # free, contiguous
    itemsize = x2.dtype.itemsize
    vmem_bytes, num_tc = _tpu_config()
    tm, vmem_limit = _tile_plan(R, HW, itemsize, vmem_bytes, num_tc)
    grid = (pl.cdiv(R, tm),)

    out2 = pl.pallas_call(
        _in_kernel,
        out_shape=jax.ShapeDtypeStruct((R, HW), x_nchw.dtype),
        grid_spec=pltpu.PrefetchScalarGridSpec(
            num_scalar_prefetch=0,
            grid=grid,
            in_specs=[pl.BlockSpec((tm, HW), lambda i: (i, 0))],
            out_specs=pl.BlockSpec((tm, HW), lambda i: (i, 0)),
        ),
        compiler_params=pltpu.CompilerParams(
            dimension_semantics=("parallel",),
            vmem_limit_bytes=vmem_limit),
        cost_estimate=pl.CostEstimate(
            flops=int(5 * R * HW), transcendentals=int(R),
            bytes_accessed=int(2 * R * HW * itemsize)),
    )(x2)

    return out2.reshape(N, C, H, W)


# ---------------------------------------------------------------------------
# CustomNorm wrapper (mirrors the PyTorch module)
# ---------------------------------------------------------------------------
class CustomNorm:
    def __init__(self, norm_type, dim=None):
        self.norm_type = norm_type
        self.dim = dim
        if norm_type == 'bn':
            # BatchNorm2d default init: weight=1, bias=0
            self.weight = jnp.ones((dim,), jnp.float32)
            self.bias = jnp.zeros((dim,), jnp.float32)
        elif norm_type == 'in':
            pass  # InstanceNorm2d default: affine=False (no params)
        else:
            raise NotImplementedError(f'{norm_type} is not implemented!!!!')

    def __call__(self, x):
        if self.norm_type == 'bn':
            return batch_norm_2d(x, self.weight, self.bias)
        return instance_norm_2d(x)


# ---------------------------------------------------------------------------
# Pure-JAX references for correctness checking
# ---------------------------------------------------------------------------
def _bn_ref(x, w, b):
    mean = jnp.mean(x, axis=(0, 2, 3), keepdims=True)
    var = jnp.mean((x - mean) ** 2, axis=(0, 2, 3), keepdims=True)
    y = (x - mean) * jax.lax.rsqrt(var + EPS)
    return y * w[None, :, None, None] + b[None, :, None, None]


def _in_ref(x):
    mean = jnp.mean(x, axis=(2, 3), keepdims=True)
    var = jnp.mean((x - mean) ** 2, axis=(2, 3), keepdims=True)
    return (x - mean) * jax.lax.rsqrt(var + EPS)


if __name__ == "__main__":
    key = jax.random.PRNGKey(0)
    N, C, H, W = 2, 4, 16, 16
    x = jax.random.normal(key, (N, C, H, W), dtype=jnp.float32)

    # BatchNorm2d path (dispatches to the fused single-pass kernel here)
    bn = CustomNorm('bn', dim=C)
    y_bn = jax.block_until_ready(bn(x))
    y_bn_ref = _bn_ref(x, bn.weight, bn.bias)
    assert y_bn.shape == x.shape
    assert jnp.allclose(y_bn, y_bn_ref, atol=2e-5, rtol=2e-5)

    # Also exercise the tiled two-pass BN path (used when x exceeds VMEM)
    y_bn_tiled = jax.block_until_ready(_batch_norm_2d_tiled(x, bn.weight, bn.bias))
    assert jnp.allclose(y_bn_tiled, y_bn_ref, atol=2e-5, rtol=2e-5)

    # InstanceNorm2d path
    inn = CustomNorm('in', dim=C)
    y_in = jax.block_until_ready(inn(x))
    assert y_in.shape == x.shape
    assert jnp.allclose(y_in, _in_ref(x), atol=2e-5, rtol=2e-5)

    print("KERNEL_OK")
</pallas_src>

<mosaic_0001>
module attributes {stable_mosaic.version = 11 : i64} {
  func.func @_bn_fused_kernel(%arg0: memref<2x4x256xf32, #tpu.memory_space<vmem>>, %arg1: memref<1x4x1xf32, #tpu.memory_space<vmem>>, %arg2: memref<1x4x1xf32, #tpu.memory_space<vmem>>, %arg3: memref<2x4x256xf32, #tpu.memory_space<vmem>>) attributes {dimension_semantics = [], scalar_prefetch = 0 : i64, scratch_operands = 0 : i64, tpu.core_type = #tpu.core_type<tc>} {
    %c0 = arith.constant 0 : index
    %c0_0 = arith.constant 0 : index
    %c0_1 = arith.constant 0 : index
    %0 = vector.load %arg0[%c0, %c0_0, %c0_1] : memref<2x4x256xf32, #tpu.memory_space<vmem>>, vector<2x4x256xf32>
    %cst = arith.constant dense<0.000000e+00> : vector<2x4xf32>
    %1 = vector.multi_reduction <add>, %0, %cst [2] : vector<2x4x256xf32> to vector<2x4xf32>
    %2 = vector.shape_cast %1 : vector<2x4xf32> to vector<2x4x1xf32>
    %cst_2 = arith.constant dense<0.000000e+00> : vector<4x1xf32>
    %3 = vector.multi_reduction <add>, %2, %cst_2 [0] : vector<2x4x1xf32> to vector<4x1xf32>
    %4 = vector.shape_cast %3 : vector<4x1xf32> to vector<1x4x1xf32>
    %cst_3 = arith.constant 5.120000e+02 : f32
    %5 = vector.broadcast %cst_3 : f32 to vector<1x4x1xf32>
    %6 = arith.divf %4, %5 : vector<1x4x1xf32>
    %7 = vector.broadcast %6 : vector<1x4x1xf32> to vector<2x4x256xf32>
    %8 = arith.subf %0, %7 : vector<2x4x256xf32>
    %9 = arith.mulf %8, %8 : vector<2x4x256xf32>
    %cst_4 = arith.constant dense<0.000000e+00> : vector<2x4xf32>
    %10 = vector.multi_reduction <add>, %9, %cst_4 [2] : vector<2x4x256xf32> to vector<2x4xf32>
    %11 = vector.shape_cast %10 : vector<2x4xf32> to vector<2x4x1xf32>
    %cst_5 = arith.constant dense<0.000000e+00> : vector<4x1xf32>
    %12 = vector.multi_reduction <add>, %11, %cst_5 [0] : vector<2x4x1xf32> to vector<4x1xf32>
    %13 = vector.shape_cast %12 : vector<4x1xf32> to vector<1x4x1xf32>
    %cst_6 = arith.constant 5.120000e+02 : f32
    %14 = vector.broadcast %cst_6 : f32 to vector<1x4x1xf32>
    %15 = arith.divf %13, %14 : vector<1x4x1xf32>
    %cst_7 = arith.constant 9.99999974E-6 : f32
    %16 = vector.broadcast %cst_7 : f32 to vector<1x4x1xf32>
    %17 = arith.addf %15, %16 : vector<1x4x1xf32>
    %18 = math.rsqrt %17 : vector<1x4x1xf32>
    %c0_8 = arith.constant 0 : index
    %c0_9 = arith.constant 0 : index
    %c0_10 = arith.constant 0 : index
    %19 = vector.load %arg1[%c0_8, %c0_9, %c0_10] : memref<1x4x1xf32, #tpu.memory_space<vmem>>, vector<1x4x1xf32>
    %20 = arith.mulf %18, %19 : vector<1x4x1xf32>
    %21 = vector.broadcast %20 : vector<1x4x1xf32> to vector<2x4x256xf32>
    %22 = arith.mulf %8, %21 : vector<2x4x256xf32>
    %c0_11 = arith.constant 0 : index
    %c0_12 = arith.constant 0 : index
    %c0_13 = arith.constant 0 : index
    %23 = vector.load %arg2[%c0_11, %c0_12, %c0_13] : memref<1x4x1xf32, #tpu.memory_space<vmem>>, vector<1x4x1xf32>
    %24 = vector.broadcast %23 : vector<1x4x1xf32> to vector<2x4x256xf32>
    %25 = arith.addf %22, %24 : vector<2x4x256xf32>
    %c0_14 = arith.constant 0 : index
    %c0_15 = arith.constant 0 : index
    %c0_16 = arith.constant 0 : index
    %26 = vector.load %arg3[%c0_14, %c0_15, %c0_16] : memref<2x4x256xf32, #tpu.memory_space<vmem>>, vector<2x4x256xf32>
    tpu.vector_store %arg3[%c0_14, %c0_15, %c0_16], %25 {strides = array<i32>} : memref<2x4x256xf32, #tpu.memory_space<vmem>>, vector<2x4x256xf32>,
    return
  }
}

</mosaic_0001>

<llo_original>
// kernel: tpu_custom_call.1
$region0: #{tpu_custom_call.1}
  #allocation0 [shape = 'u32[]', space=smem, size = 0x4, offset = 0x4, fixed_abs, tag = 'smem constant byte address 0x4 - core index']
  #allocation1 [shape = 'u32[144,128]{1,0:T(1,128)}', space=vmem, size = 0x12000, scoped, tag = 'internal scratch']
  %s0 = inlined_call_operand.hbm [shape: f32[2,4,256], index: 0, kind: input, shape index: {}]
  %s1 = inlined_call_operand.vmem [shape: f32[1,4,1], index: 1, kind: input, shape index: {}]
  %s2 = inlined_call_operand.vmem [shape: f32[1,4,1], index: 2, kind: input, shape index: {}]
  %s3 = inlined_call_operand.hbm [shape: f32[2,4,256], index: 3, kind: output, shape index: {}]
  %s4 = sld [smem:[#allocation0]]
  $region26: #{tpu_custom_call.1} parent=0
    _
  %s6 = ssub.s32 1, %s4
  %s7 = scalar_select 0, %s6, %s4
  $region1: #{tpu_custom_call.1} parent=0
    #allocation2 [shape = 'u8[8192]{0}', space=vmem, size = 0x2000, scoped, tag = 'input window, operand 0, single buffered']
    #allocation3 [shape = 's32[1]{0}', space=sflag, size = 0x4, scoped, tag = 'scoped memory for tpu_custom_call.1']
    #allocation4 [shape = 's32[1]{0}', space=sflag, size = 0x4, scoped, tag = 'scoped memory for tpu_custom_call.1']
    #allocation5 [shape = 'u8[8192]{0}', space=vmem, size = 0x2000, scoped, tag = 'output window, operand 0, single buffered']
    %8 = vsyncpa [#allocation3], 0
    %9 = vsyncpa [#allocation4], 0
    // Predicated region
    $region2: #{tpu_custom_call.1} parent=1 // pred_check
      _
    $region3: #{tpu_custom_call.1} parent=1 // pred_check_branch
      %11 = sbr.rel (0) target = $region5
    $region4: #{tpu_custom_call.1} parent=1 // pred_region
      %s13 = ssub.s32 256, 256
      %14 = vsyncadd [#allocation3], %s13
      %s15 = sshll.u32 [#allocation2], 4
      %s16 = int_to_ptr.vmem [resolvable:$true] %s15
      %21 = dma.hbm_to_vmem [thread:$0]  %s0, 256, %s16, [#allocation3], 128, 128, 8
    $region5: #{tpu_custom_call.1} parent=1 // pred_fallthru
      _
    // Predicated region
    $region6: #{tpu_custom_call.1} parent=1 // pred_check
      _
    $region7: #{tpu_custom_call.1} parent=1 // pred_check_branch
      %23 = sbr.rel (0) target = $region9
    $region8: #{tpu_custom_call.1} parent=1 // pred_region
      _
    $region9: #{tpu_custom_call.1} parent=1 // pred_fallthru
      _
    // Predicated region
    $region10: #{tpu_custom_call.1} parent=1 // pred_check
      _
    $region11: #{tpu_custom_call.1} parent=1 // pred_check_branch
      %25 = sbr.rel (0) target = $region13
    $region12: #{tpu_custom_call.1} parent=1 // pred_region
      _
    $region13: #{tpu_custom_call.1} parent=1 // pred_fallthru
      _
    // Predicated region
    $region14: #{tpu_custom_call.1} parent=1 // pred_check
      _
    $region15: #{tpu_custom_call.1} parent=1 // pred_check_branch
      %27 = sbr.rel (0) target = $region17
    $region16: #{tpu_custom_call.1} parent=1 // pred_region
      %28 = dma.done [#allocation3], 256
    $region17: #{tpu_custom_call.1} parent=1 // pred_fallthru
      _
    %v29 = vld [vmem:[#allocation2] sm:$0xff]
    %v30 = vld [vmem:[#allocation2 + $0x8] sm:$0xff]
    %v33 = vcombine.high %v29, %v29
    %v34 = vcombine.high %v30, %v30
    %vm37 = vcmask 1043456
    %v38 = vsel %vm37, %v29, 0.0
    %v39 = vsel %vm37, %v33, 0.0
    %v40 = vadd.f32 %v38, %v39
    %41 = vadd.xlane.f32.xlu0 %v40
    %v42 = vpop.xlane.xlu0 %41
    %v43 = vsel %vm37, %v30, 0.0
    %v44 = vsel %vm37, %v34, 0.0
    %v45 = vadd.f32 %v43, %v44
    %46 = vadd.xlane.f32.xlu0 %v45
    %v47 = vpop.xlane.xlu0 %46
    %v48 = vsel %vm37, %v42, 0.0
    %v49 = vsel %vm37, %v47, 0.0
    %v50 = vadd.f32 %v48, %v49
    %v51 = vrcp.pop 512.0
    %v52 = vmul.f32 %v50, %v51
    %v55 = vunpack.c.l.s4 839922192
    %v56 = vunpack.c.0.s8 %v55
    %v57 = vlaneseq
    %v58 = vshrl.u32 %v57, 7
    %v59 = vsub.s32 %v56, %v58
    %v60 = vrot.slane %v52, %v59
    %v62 = vsub.f32 %v29, %v60
    %v63 = vsub.f32 %v30, %v60
    %v64 = vmul.f32 %v62, %v62
    %v65 = vmul.f32 %v63, %v63
    %v68 = vcombine.high %v64, %v64
    %v69 = vcombine.high %v65, %v65
    %v72 = vsel %vm37, %v64, 0.0
    %v73 = vsel %vm37, %v68, 0.0
    %v74 = vadd.f32 %v72, %v73
    %75 = vadd.xlane.f32.xlu0 %v74
    %v76 = vpop.xlane.xlu0 %75
    %v77 = vsel %vm37, %v65, 0.0
    %v78 = vsel %vm37, %v69, 0.0
    %v79 = vadd.f32 %v77, %v78
    %80 = vadd.xlane.f32.xlu0 %v79
    %v81 = vpop.xlane.xlu0 %80
    %v82 = vsel %vm37, %v76, 0.0
    %v83 = vsel %vm37, %v81, 0.0
    %v84 = vadd.f32 %v82, %v83
    %v85 = vmul.f32 %v84, %v51
    %v86 = vadd.f32 %v85, 1e-05
    %v87 = vrsqrt.pop %v86
    %v88 = vld [vmem:[%s1] sm:$0xf]
    %v89 = vmul.f32 %v87, %v88
    %91 = vset.pattern.permute.xlu0 0
    %92 = vperm.xlu0 %91, %v89
    %v93 = vpop.permute.xlu0 %92
    %v95 = vunpack.c.l.s4 839922192
    %v96 = vunpack.c.0.s8 %v95
    %v97 = vlaneseq
    %v98 = vshrl.u32 %v97, 7
    %v99 = vsub.s32 %v96, %v98
    %v100 = vrot.slane %v93, %v99
    %v102 = vmul.f32 %v62, %v100
    %v103 = vmul.f32 %v63, %v100
    %v104 = vld [vmem:[%s2] sm:$0xf]
    %106 = vset.pattern.permute.xlu0 0
    %107 = vperm.xlu0 %106, %v104
    %v108 = vpop.permute.xlu0 %107
    %v110 = vunpack.c.l.s4 839922192
    %v111 = vunpack.c.0.s8 %v110
    %v112 = vlaneseq
    %v113 = vshrl.u32 %v112, 7
    %v114 = vsub.s32 %v111, %v113
    %v115 = vrot.slane %v108, %v114
    %v117 = vadd.f32 %v102, %v115
    %v118 = vadd.f32 %v103, %v115
    %119 = vst [vmem:[#allocation5] sm:$0xff] %v117
    %120 = vst [vmem:[#allocation5 + $0x8] sm:$0xff] %v118
    // Predicated region
    $region18: #{tpu_custom_call.1} parent=1 // pred_check
      _
    $region19: #{tpu_custom_call.1} parent=1 // pred_check_branch
      %122 = sbr.rel (0) target = $region21
    $region20: #{tpu_custom_call.1} parent=1 // pred_region
      %s124 = ssub.s32 256, 256
      %125 = vsyncadd [#allocation4], %s124
      %s126 = sshll.u32 [#allocation5], 4
      %s127 = int_to_ptr.vmem [resolvable:$true] %s126
      %132 = dma.vmem_to_hbm [thread:$0]  %s127, 256, %s3, [#allocation4], 128, 128, 8
    $region21: #{tpu_custom_call.1} parent=1 // pred_fallthru
      _
    // Predicated region
    $region22: #{tpu_custom_call.1} parent=1 // pred_check
      _
    $region23: #{tpu_custom_call.1} parent=1 // pred_check_branch
      %134 = sbr.rel (0) target = $region25
    $region24: #{tpu_custom_call.1} parent=1 // pred_region
      %135 = dma.done [#allocation4], 256
    $region25: #{tpu_custom_call.1} parent=1 // pred_fallthru
      _
    %136 = vsyncpa [#allocation3], 1
    %137 = vsyncpa [#allocation4], 1

</llo_original>
